<compile_context>
chip_gen: v7x
topology: tpu7x:2x2x1
jax: 0.10.0
libtpu: 0.0.40
codegen_flags: <defaults>
</compile_context>

<pallas_src>
import math
from typing import NamedTuple

import jax
import jax.numpy as jnp
from jax.experimental import pallas as pl
from jax.experimental.pallas import tpu as pltpu


def _cdiv(a, b):
    return -(-a // b)


def _round_up(n, m):
    return ((n + m - 1) // m) * m


def _default_vmem_limit():
    """Generation-aware VMEM limit with headroom for Mosaic scratch."""
    try:
        cap = pltpu.get_tpu_info().vmem_capacity_bytes
    except Exception:
        cap = None
    if cap is None:
        # Safe on every generation (v7x has only 64 MiB physical per TC).
        return 48 * 1024 * 1024
    return min(100 * 1024 * 1024, max(32 * 1024 * 1024, cap - 16 * 1024 * 1024))


# ----------------------------------------------------------------------------
# Kernels
# ----------------------------------------------------------------------------

def _dann_fused_kernel(x_ref, w1_ref, b1_ref, w2_ref, b2_ref, w3_ref, b3_ref,
                       o_ref):
    # GradientReversalLayer: identity in the forward pass.
    x = x_ref[...]

    # fc1 + relu (MXU f32 accumulation, bias/relu on the VPU).
    h1 = jnp.dot(x, w1_ref[...], preferred_element_type=jnp.float32)
    h1 = jnp.maximum(h1 + b1_ref[...], 0.0).astype(w2_ref.dtype)

    # dropout(p=0.5): eval-mode identity.

    # fc2 + relu
    h2 = jnp.dot(h1, w2_ref[...], preferred_element_type=jnp.float32)
    h2 = jnp.maximum(h2 + b2_ref[...], 0.0).astype(w3_ref.dtype)

    # fc3 logits, stored at the true out_dim (no lane padding of the output).
    out = jnp.dot(h2, w3_ref[...], preferred_element_type=jnp.float32)
    o_ref[...] = (out + b3_ref[...]).astype(o_ref.dtype)


def _dann_ktiled_kernel(x_ref, w1_ref, b1_ref, w2_ref, b2_ref, w3_ref, b3_ref,
                        o_ref, acc_ref):
    # Hidden-dim-tiled variant for weights too large to keep resident:
    # grid = (batch_tiles, hidden_tiles); the hidden axis is a reduction for
    # fc2 with a VMEM f32 accumulator (init at k==0, finalize at the last k).
    k = pl.program_id(1)

    @pl.when(k == 0)
    def _():
        acc_ref[...] = jnp.zeros_like(acc_ref)

    # fc1 column slice: h1_k = relu(x @ W1[:, k-th tile] + b1[k-th tile]).
    x = x_ref[...]
    h1 = jnp.dot(x, w1_ref[...], preferred_element_type=jnp.float32)
    h1 = jnp.maximum(h1 + b1_ref[...], 0.0).astype(w2_ref.dtype)

    # Partial fc2 contraction over this hidden tile.
    acc_ref[...] += jnp.dot(h1, w2_ref[...], preferred_element_type=jnp.float32)

    @pl.when(k == pl.num_programs(1) - 1)
    def _():
        h2 = jnp.maximum(acc_ref[...] + b2_ref[...], 0.0).astype(w3_ref.dtype)
        out = jnp.dot(h2, w3_ref[...], preferred_element_type=jnp.float32)
        o_ref[...] = (out + b3_ref[...]).astype(o_ref.dtype)


# ----------------------------------------------------------------------------
# Parameter preparation (do once, reuse across forward calls)
# ----------------------------------------------------------------------------

class PreparedParams(NamedTuple):
    w1: jax.Array   # (input_dim, Hp)   compute dtype
    b1: jax.Array   # (1, Hp)           float32
    w2: jax.Array   # (Hp, Hp)          compute dtype
    b2: jax.Array   # (1, Hp)           float32
    w3: jax.Array   # (Hp, out_dim)     compute dtype
    b3: jax.Array   # (1, out_dim)      float32
    hidden_dim: int
    out_dim: int


def prepare_params(params, compute_dtype=jnp.bfloat16):
    """Pad the hidden dim to a 128-lane multiple and cast weights once.

    Call once and reuse the result; the pads/casts are plain XLA HBM copies
    that would otherwise run on every forward call.
    """
    w1, b1, w2, b2, w3, b3 = params
    input_dim, hidden_dim = w1.shape
    out_dim = w3.shape[1]
    Hp = _round_up(hidden_dim, 128)

    def pad2(a, rows, cols):
        return jnp.pad(a, ((0, rows - a.shape[0]), (0, cols - a.shape[1])))

    b1 = jnp.asarray(b1).reshape(1, -1)
    b2 = jnp.asarray(b2).reshape(1, -1)
    b3 = jnp.asarray(b3).reshape(1, -1)

    return PreparedParams(
        pad2(w1, input_dim, Hp).astype(compute_dtype),
        pad2(b1, 1, Hp).astype(jnp.float32),
        pad2(w2, Hp, Hp).astype(compute_dtype),
        pad2(b2, 1, Hp).astype(jnp.float32),
        pad2(w3, Hp, out_dim).astype(compute_dtype),
        b3.astype(jnp.float32),
        hidden_dim,
        out_dim,
    )


# ----------------------------------------------------------------------------
# Forward wrapper
# ----------------------------------------------------------------------------

def domain_adversarial_classifier(
    x,
    params,
    alpha=1.0,
    *,
    compute_dtype=jnp.bfloat16,
    batch_tile=512,
    hidden_tile=None,
    vmem_limit_bytes=None,
):
    """Fused forward pass of DomainAdversarialClassifier.

    `alpha` only matters for the backward GRL (identity forward) -> unused.
    `params` may be the raw 6-tuple (padded/cast per call) or, preferably, a
    cached PreparedParams from prepare_params().
    `hidden_tile`: force the hidden-tiled reduction kernel with this tile
    (rounded to 128, snapped to a divisor of the padded hidden dim); when
    None it is chosen automatically if the weights don't fit VMEM.
    """
    del alpha  # GradientReversalLayer forward is identity.

    if not isinstance(params, PreparedParams):
        params = prepare_params(params, compute_dtype)
    w1, b1, w2, b2, w3, b3, _, out_dim = params

    B, K = x.shape
    Hp = w1.shape[1]
    out_dtype = x.dtype

    if vmem_limit_bytes is None:
        vmem_limit_bytes = _default_vmem_limit()

    # Ragged batch: smallest (multiple-of-8) tile covering B in
    # ceil(B / batch_tile) steps -> wastes at most a few rows, never a tile.
    n_b = max(1, _cdiv(B, batch_tile))
    tile = _round_up(_cdiv(B, n_b), 8)
    Bp = n_b * tile

    xp = x if Bp == B else jnp.pad(x, ((0, Bp - B), (0, 0)))
    xp = xp.astype(w1.dtype)

    # Pick fused (resident, single-buffered weights) vs hidden-tiled path.
    itemsize = jnp.dtype(w1.dtype).itemsize
    resident_bytes = itemsize * (w1.size + w2.size + w3.size)
    act_bytes = (2 * tile * K + 2 * tile * out_dim) * 4 + 3 * tile * Hp * 4
    use_ktiled = hidden_tile is not None or (
        resident_bytes + act_bytes > int(0.6 * vmem_limit_bytes)
    )

    # Short grids: megacore sharding would duplicate the weight DMAs per core
    # without enough batch work to amortize it.
    bsem = "arbitrary" if n_b <= 2 else "parallel"
    single = pl.Buffered(1)  # constant-index operands: no double buffering

    if not use_ktiled:
        grid_spec = pltpu.PrefetchScalarGridSpec(
            num_scalar_prefetch=0,
            grid=(n_b,),
            in_specs=[
                pl.BlockSpec((tile, K), lambda i: (i, 0)),                       # x
                pl.BlockSpec((K, Hp), lambda i: (0, 0), pipeline_mode=single),   # W1
                pl.BlockSpec((1, Hp), lambda i: (0, 0), pipeline_mode=single),   # b1
                pl.BlockSpec((Hp, Hp), lambda i: (0, 0), pipeline_mode=single),  # W2
                pl.BlockSpec((1, Hp), lambda i: (0, 0), pipeline_mode=single),   # b2
                pl.BlockSpec((Hp, out_dim), lambda i: (0, 0),
                             pipeline_mode=single),                              # W3
                pl.BlockSpec((1, out_dim), lambda i: (0, 0),
                             pipeline_mode=single),                              # b3
            ],
            out_specs=pl.BlockSpec((tile, out_dim), lambda i: (i, 0)),
        )
        kernel = _dann_fused_kernel
        dims = (bsem,)
    else:
        # Hidden tile: multiple of 128 that divides the (128-padded) hidden dim.
        m = Hp // 128
        t_req = max(1, (hidden_tile if hidden_tile is not None else 512) // 128)
        d = max(dd for dd in range(1, m + 1) if m % dd == 0 and dd <= t_req)
        th = d * 128
        n_k = Hp // th

        grid_spec = pltpu.PrefetchScalarGridSpec(
            num_scalar_prefetch=0,
            grid=(n_b, n_k),
            in_specs=[
                pl.BlockSpec((tile, K), lambda i, k: (i, 0)),                    # x
                pl.BlockSpec((K, th), lambda i, k: (0, k)),                      # W1 cols
                pl.BlockSpec((1, th), lambda i, k: (0, k)),                      # b1 cols
                pl.BlockSpec((th, Hp), lambda i, k: (k, 0)),                     # W2 rows
                pl.BlockSpec((1, Hp), lambda i, k: (0, 0), pipeline_mode=single),# b2
                pl.BlockSpec((Hp, out_dim), lambda i, k: (0, 0),
                             pipeline_mode=single),                              # W3
                pl.BlockSpec((1, out_dim), lambda i, k: (0, 0),
                             pipeline_mode=single),                              # b3
            ],
            out_specs=pl.BlockSpec((tile, out_dim), lambda i, k: (i, 0)),
            scratch_shapes=[pltpu.VMEM((tile, Hp), jnp.float32)],
        )
        kernel = _dann_ktiled_kernel
        dims = (bsem, "arbitrary")

    out = pl.pallas_call(
        kernel,
        out_shape=jax.ShapeDtypeStruct((Bp, out_dim), out_dtype),
        grid_spec=grid_spec,
        compiler_params=pltpu.CompilerParams(
            dimension_semantics=dims,
            vmem_limit_bytes=vmem_limit_bytes,
        ),
    )(xp, w1, b1, w2, b2, w3, b3)

    return out[:B]


# ----------------------------------------------------------------------------
# Init / reference
# ----------------------------------------------------------------------------

def init_params(key, input_dim, hidden_dim, out_dim=2, dtype=jnp.float32):
    """nn.Linear-style init; weights stored transposed: (in, out)."""
    k1, k2, k3, k4, k5, k6 = jax.random.split(key, 6)

    def lin(kw, kb, fan_in, fan_out):
        bound = 1.0 / math.sqrt(fan_in)
        w = jax.random.uniform(kw, (fan_in, fan_out), dtype, -bound, bound)
        b = jax.random.uniform(kb, (1, fan_out), dtype, -bound, bound)
        return w, b

    w1, b1 = lin(k1, k2, input_dim, hidden_dim)
    w2, b2 = lin(k3, k4, hidden_dim, hidden_dim)
    w3, b3 = lin(k5, k6, hidden_dim, out_dim)
    return (w1, b1, w2, b2, w3, b3)


def reference_forward(x, params):
    w1, b1, w2, b2, w3, b3 = params
    h1 = jnp.maximum(x @ w1 + b1, 0.0)
    h2 = jnp.maximum(h1 @ w2 + b2, 0.0)
    return h2 @ w3 + b3


if __name__ == "__main__":
    key = jax.random.PRNGKey(0)
    kx, kp, kx2, kp2 = jax.random.split(key, 4)

    # Small shapes consistent with the module (batch deliberately ragged).
    batch, input_dim, hidden_dim = 12, 32, 32
    x = jax.random.normal(kx, (batch, input_dim), dtype=jnp.float32)
    params = init_params(kp, input_dim, hidden_dim)
    ref = reference_forward(x, params)

    # f32 compute path (fused kernel) — should match the reference closely.
    prep_f32 = prepare_params(params, compute_dtype=jnp.float32)
    out_f32 = jax.block_until_ready(
        domain_adversarial_classifier(x, prep_f32, alpha=0.7))
    assert out_f32.shape == (batch, 2)
    assert jnp.allclose(out_f32, ref, atol=1e-4, rtol=1e-4), "f32 mismatch"

    # Default bf16 compute path (fused kernel, f32 accumulation).
    prep_bf16 = prepare_params(params)  # bf16 default; cache & reuse per call
    out_bf16 = jax.block_until_ready(
        domain_adversarial_classifier(x, prep_bf16, alpha=0.7))
    assert out_bf16.shape == (batch, 2)
    assert jnp.allclose(out_bf16, ref, atol=1e-1, rtol=1e-1), "bf16 mismatch"

    # Hidden-tiled reduction path (auto-selected for large hidden dims on
    # tight-VMEM parts like v7x); forced here at a small size to exercise it.
    batch2, input_dim2, hidden_dim2 = 20, 48, 256
    x2 = jax.random.normal(kx2, (batch2, input_dim2), dtype=jnp.float32)
    params2 = init_params(kp2, input_dim2, hidden_dim2)
    ref2 = reference_forward(x2, params2)
    prep2 = prepare_params(params2, compute_dtype=jnp.float32)
    out_kt = jax.block_until_ready(
        domain_adversarial_classifier(x2, prep2, alpha=1.0, hidden_tile=128))
    assert out_kt.shape == (batch2, 2)
    assert jnp.allclose(out_kt, ref2, atol=1e-4, rtol=1e-4), "ktiled mismatch"

    print("KERNEL_OK")
</pallas_src>

<mosaic_0001>
module attributes {stable_mosaic.version = 11 : i64} {
  func.func @_dann_fused_kernel(%arg0: i32, %arg1: memref<16x32xf32, #tpu.memory_space<vmem>>, %arg2: memref<32x128xf32, #tpu.memory_space<vmem>>, %arg3: memref<1x128xf32, #tpu.memory_space<vmem>>, %arg4: memref<128x128xf32, #tpu.memory_space<vmem>>, %arg5: memref<1x128xf32, #tpu.memory_space<vmem>>, %arg6: memref<128x2xf32, #tpu.memory_space<vmem>>, %arg7: memref<1x2xf32, #tpu.memory_space<vmem>>, %arg8: memref<16x2xf32, #tpu.memory_space<vmem>>) attributes {dimension_semantics = [#tpu.dimension_semantics<arbitrary>], iteration_bounds = array<i64: 1>, scalar_prefetch = 0 : i64, scratch_operands = 0 : i64, tpu.core_type = #tpu.core_type<tc>, window_params = [{transform_indices = @transform_0, window_bounds = array<i64: 16, 32>}, {pipeline_mode = #tpu.pipeline_mode<synchronous>, transform_indices = @transform_1, window_bounds = array<i64: 32, 128>}, {pipeline_mode = #tpu.pipeline_mode<synchronous>, transform_indices = @transform_2, window_bounds = array<i64: 1, 128>}, {pipeline_mode = #tpu.pipeline_mode<synchronous>, transform_indices = @transform_3, window_bounds = array<i64: 128, 128>}, {pipeline_mode = #tpu.pipeline_mode<synchronous>, transform_indices = @transform_4, window_bounds = array<i64: 1, 128>}, {pipeline_mode = #tpu.pipeline_mode<synchronous>, transform_indices = @transform_5, window_bounds = array<i64: 128, 2>}, {pipeline_mode = #tpu.pipeline_mode<synchronous>, transform_indices = @transform_6, window_bounds = array<i64: 1, 2>}, {transform_indices = @transform_7, window_bounds = array<i64: 16, 2>}]} {
    %c0 = arith.constant 0 : index
    %c0_0 = arith.constant 0 : index
    %0 = vector.load %arg1[%c0, %c0_0] : memref<16x32xf32, #tpu.memory_space<vmem>>, vector<16x32xf32>
    %c0_1 = arith.constant 0 : index
    %c0_2 = arith.constant 0 : index
    %1 = vector.load %arg2[%c0_1, %c0_2] : memref<32x128xf32, #tpu.memory_space<vmem>>, vector<32x128xf32>
    %cst = arith.constant dense<0.000000e+00> : vector<16x128xf32>
    %2 = tpu.matmul %0, %1, %cst {dimension_numbers = #tpu.dot_dimension_numbers<[1], [0], [0], [1], [0, 0, 1, 1], [], []>} : vector<16x32xf32>, vector<32x128xf32>, vector<16x128xf32> -> vector<16x128xf32>
    %c0_3 = arith.constant 0 : index
    %c0_4 = arith.constant 0 : index
    %3 = vector.load %arg3[%c0_3, %c0_4] : memref<1x128xf32, #tpu.memory_space<vmem>>, vector<1x128xf32>
    %4 = vector.broadcast %3 : vector<1x128xf32> to vector<16x128xf32>
    %5 = arith.addf %2, %4 : vector<16x128xf32>
    %cst_5 = arith.constant 0.000000e+00 : f32
    %6 = vector.broadcast %cst_5 : f32 to vector<16x128xf32>
    %7 = arith.maximumf %5, %6 : vector<16x128xf32>
    %c0_6 = arith.constant 0 : index
    %c0_7 = arith.constant 0 : index
    %8 = vector.load %arg4[%c0_6, %c0_7] : memref<128x128xf32, #tpu.memory_space<vmem>>, vector<128x128xf32>
    %cst_8 = arith.constant dense<0.000000e+00> : vector<16x128xf32>
    %9 = tpu.matmul %7, %8, %cst_8 {dimension_numbers = #tpu.dot_dimension_numbers<[1], [0], [0], [1], [0, 0, 1, 1], [], []>} : vector<16x128xf32>, vector<128x128xf32>, vector<16x128xf32> -> vector<16x128xf32>
    %c0_9 = arith.constant 0 : index
    %c0_10 = arith.constant 0 : index
    %10 = vector.load %arg5[%c0_9, %c0_10] : memref<1x128xf32, #tpu.memory_space<vmem>>, vector<1x128xf32>
    %11 = vector.broadcast %10 : vector<1x128xf32> to vector<16x128xf32>
    %12 = arith.addf %9, %11 : vector<16x128xf32>
    %cst_11 = arith.constant 0.000000e+00 : f32
    %13 = vector.broadcast %cst_11 : f32 to vector<16x128xf32>
    %14 = arith.maximumf %12, %13 : vector<16x128xf32>
    %c0_12 = arith.constant 0 : index
    %c0_13 = arith.constant 0 : index
    %15 = vector.load %arg6[%c0_12, %c0_13] : memref<128x2xf32, #tpu.memory_space<vmem>>, vector<128x2xf32>
    %cst_14 = arith.constant dense<0.000000e+00> : vector<16x2xf32>
    %16 = tpu.matmul %14, %15, %cst_14 {dimension_numbers = #tpu.dot_dimension_numbers<[1], [0], [0], [1], [0, 0, 1, 1], [], []>} : vector<16x128xf32>, vector<128x2xf32>, vector<16x2xf32> -> vector<16x2xf32>
    %c0_15 = arith.constant 0 : index
    %c0_16 = arith.constant 0 : index
    %17 = vector.load %arg7[%c0_15, %c0_16] : memref<1x2xf32, #tpu.memory_space<vmem>>, vector<1x2xf32>
    %18 = vector.broadcast %17 : vector<1x2xf32> to vector<16x2xf32>
    %19 = arith.addf %16, %18 : vector<16x2xf32>
    %c0_17 = arith.constant 0 : index
    %c0_18 = arith.constant 0 : index
    %20 = vector.load %arg8[%c0_17, %c0_18] : memref<16x2xf32, #tpu.memory_space<vmem>>, vector<16x2xf32>
    tpu.vector_store %arg8[%c0_17, %c0_18], %19 {strides = array<i32>} : memref<16x2xf32, #tpu.memory_space<vmem>>, vector<16x2xf32>,
    return
  }
  func.func @transform_0(%arg0: i32) -> (i32, i32) {
    %c0_i32 = arith.constant 0 : i32
    %c0_i32_0 = arith.constant 0 : i32
    return %arg0, %c0_i32 : i32, i32
  }
  func.func @transform_1(%arg0: i32) -> (i32, i32) {
    %c0_i32 = arith.constant 0 : i32
    %c0_i32_0 = arith.constant 0 : i32
    %c0_i32_1 = arith.constant 0 : i32
    return %c0_i32, %c0_i32_0 : i32, i32
  }
  func.func @transform_2(%arg0: i32) -> (i32, i32) {
    %c0_i32 = arith.constant 0 : i32
    %c0_i32_0 = arith.constant 0 : i32
    %c0_i32_1 = arith.constant 0 : i32
    return %c0_i32, %c0_i32_0 : i32, i32
  }
  func.func @transform_3(%arg0: i32) -> (i32, i32) {
    %c0_i32 = arith.constant 0 : i32
    %c0_i32_0 = arith.constant 0 : i32
    %c0_i32_1 = arith.constant 0 : i32
    return %c0_i32, %c0_i32_0 : i32, i32
  }
  func.func @transform_4(%arg0: i32) -> (i32, i32) {
    %c0_i32 = arith.constant 0 : i32
    %c0_i32_0 = arith.constant 0 : i32
    %c0_i32_1 = arith.constant 0 : i32
    return %c0_i32, %c0_i32_0 : i32, i32
  }
  func.func @transform_5(%arg0: i32) -> (i32, i32) {
    %c0_i32 = arith.constant 0 : i32
    %c0_i32_0 = arith.constant 0 : i32
    %c0_i32_1 = arith.constant 0 : i32
    return %c0_i32, %c0_i32_0 : i32, i32
  }
  func.func @transform_6(%arg0: i32) -> (i32, i32) {
    %c0_i32 = arith.constant 0 : i32
    %c0_i32_0 = arith.constant 0 : i32
    %c0_i32_1 = arith.constant 0 : i32
    return %c0_i32, %c0_i32_0 : i32, i32
  }
  func.func @transform_7(%arg0: i32) -> (i32, i32) {
    %c0_i32 = arith.constant 0 : i32
    %c0_i32_0 = arith.constant 0 : i32
    return %arg0, %c0_i32 : i32, i32
  }
}

</mosaic_0001>

<llo_original>
// kernel: tpu_custom_call.1
$region0: #{tpu_custom_call.1}
  #allocation0 [shape = 'u32[]', space=smem, size = 0x4, offset = 0x4, fixed_abs, tag = 'smem constant byte address 0x4 - core index']
  #allocation1 [shape = 'u32[144,128]{1,0:T(1,128)}', space=vmem, size = 0x12000, scoped, tag = 'internal scratch']
  %s0 = inlined_call_operand.hbm [shape: f32[16,32], index: 0, kind: input, shape index: {}]
  %s1 = inlined_call_operand.hbm [shape: f32[32,128], index: 1, kind: input, shape index: {}]
  %s2 = inlined_call_operand.vmem [shape: f32[1,128], index: 2, kind: input, shape index: {}]
  %s3 = inlined_call_operand.vmem [shape: f32[128,128], index: 3, kind: input, shape index: {}]
  %s4 = inlined_call_operand.vmem [shape: f32[1,128], index: 4, kind: input, shape index: {}]
  %s5 = inlined_call_operand.vmem [shape: f32[128,2], index: 5, kind: input, shape index: {}]
  %s6 = inlined_call_operand.vmem [shape: f32[1,2], index: 6, kind: input, shape index: {}]
  %s7 = inlined_call_operand.vmem [shape: f32[16,2], index: 7, kind: output, shape index: {}]
  %s8 = sld [smem:[#allocation0]]
  $region46: #{tpu_custom_call.1} parent=0
    _
  %s10 = ssub.s32 1, %s8
  %s11 = scalar_select 0, %s10, %s8
  $region1: #{tpu_custom_call.1} parent=0
    #allocation2 [shape = 'u8[8192]{0}', space=vmem, size = 0x2000, scoped, tag = 'input window, operand 0, single buffered']
    #allocation3 [shape = 's32[1]{0}', space=sflag, size = 0x4, scoped, tag = 'scoped memory for tpu_custom_call.1']
    #allocation4 [shape = 'u8[16384]{0}', space=vmem, size = 0x4000, scoped, tag = 'input window, operand 1, single buffered']
    #allocation5 [shape = 's32[1]{0}', space=sflag, size = 0x4, scoped, tag = 'scoped memory for tpu_custom_call.1']
    %12 = vsyncpa [#allocation3], 0
    %13 = vsyncpa [#allocation5], 0
    // Predicated region
    $region2: #{tpu_custom_call.1} parent=1 // pred_check
      _
    $region3: #{tpu_custom_call.1} parent=1 // pred_check_branch
      %15 = sbr.rel (0) target = $region5
    $region4: #{tpu_custom_call.1} parent=1 // pred_region
      %s17 = ssub.s32 256, 256
      %18 = vsyncadd [#allocation3], %s17
      %s19 = sshll.u32 [#allocation2], 4
      %s20 = int_to_ptr.vmem [resolvable:$true] %s19
      %25 = dma.hbm_to_vmem [thread:$0]  %s0, 256, %s20, [#allocation3], 128, 128, 8
    $region5: #{tpu_custom_call.1} parent=1 // pred_fallthru
      _
    // Predicated region
    $region6: #{tpu_custom_call.1} parent=1 // pred_check
      _
    $region7: #{tpu_custom_call.1} parent=1 // pred_check_branch
      %27 = sbr.rel (0) target = $region9
    $region8: #{tpu_custom_call.1} parent=1 // pred_region
      %s29 = ssub.s32 512, 512
      %30 = vsyncadd [#allocation5], %s29
      %s31 = sshll.u32 [#allocation4], 4
      %s32 = int_to_ptr.vmem [resolvable:$true] %s31
      %37 = dma.hbm_to_vmem [thread:$0]  %s1, 512, %s32, [#allocation5], 128, 128, 8
    $region9: #{tpu_custom_call.1} parent=1 // pred_fallthru
      _
    // Predicated region
    $region10: #{tpu_custom_call.1} parent=1 // pred_check
      _
    $region11: #{tpu_custom_call.1} parent=1 // pred_check_branch
      %39 = sbr.rel (0) target = $region13
    $region12: #{tpu_custom_call.1} parent=1 // pred_region
      _
    $region13: #{tpu_custom_call.1} parent=1 // pred_fallthru
      _
    // Predicated region
    $region14: #{tpu_custom_call.1} parent=1 // pred_check
      _
    $region15: #{tpu_custom_call.1} parent=1 // pred_check_branch
      %41 = sbr.rel (0) target = $region17
    $region16: #{tpu_custom_call.1} parent=1 // pred_region
      _
    $region17: #{tpu_custom_call.1} parent=1 // pred_fallthru
      _
    // Predicated region
    $region18: #{tpu_custom_call.1} parent=1 // pred_check
      _
    $region19: #{tpu_custom_call.1} parent=1 // pred_check_branch
      %43 = sbr.rel (0) target = $region21
    $region20: #{tpu_custom_call.1} parent=1 // pred_region
      _
    $region21: #{tpu_custom_call.1} parent=1 // pred_fallthru
      _
    // Predicated region
    $region22: #{tpu_custom_call.1} parent=1 // pred_check
      _
    $region23: #{tpu_custom_call.1} parent=1 // pred_check_branch
      %45 = sbr.rel (0) target = $region25
    $region24: #{tpu_custom_call.1} parent=1 // pred_region
      _
    $region25: #{tpu_custom_call.1} parent=1 // pred_fallthru
      _
    // Predicated region
    $region26: #{tpu_custom_call.1} parent=1 // pred_check
      _
    $region27: #{tpu_custom_call.1} parent=1 // pred_check_branch
      %47 = sbr.rel (0) target = $region29
    $region28: #{tpu_custom_call.1} parent=1 // pred_region
      _
    $region29: #{tpu_custom_call.1} parent=1 // pred_fallthru
      _
    // Predicated region
    $region30: #{tpu_custom_call.1} parent=1 // pred_check
      _
    $region31: #{tpu_custom_call.1} parent=1 // pred_check_branch
      %49 = sbr.rel (0) target = $region33
    $region32: #{tpu_custom_call.1} parent=1 // pred_region
      %50 = dma.done [#allocation3], 256
    $region33: #{tpu_custom_call.1} parent=1 // pred_fallthru
      _
    // Predicated region
    $region34: #{tpu_custom_call.1} parent=1 // pred_check
      _
    $region35: #{tpu_custom_call.1} parent=1 // pred_check_branch
      %52 = sbr.rel (0) target = $region37
    $region36: #{tpu_custom_call.1} parent=1 // pred_region
      %53 = dma.done [#allocation5], 512
    $region37: #{tpu_custom_call.1} parent=1 // pred_fallthru
      _
    %v54 = vld [vmem:[#allocation2] sm:$0xff]
    %v55 = vld [vmem:[#allocation2 + $0x8] sm:$0xff]
    %v56 = vld [vmem:[#allocation4] sm:$0xff]
    %v57 = vld [vmem:[#allocation4 + $0x8] sm:$0xff]
    %v58 = vld [vmem:[#allocation4 + $0x10] sm:$0xff]
    %v59 = vld [vmem:[#allocation4 + $0x18] sm:$0xff]
    %v60 = vld [vmem:[%s2] sm:$0x1]
    %v62 = vlaneseq
    %v63 = vshrl.u32 %v62, 7
    %v64 = vsub.s32 0, %v63
    %v65 = vrot.slane %v60, %v64
    %vm67 = vcmask 261120
    %v69 = vsel %vm67, %v54, 0
    %v72 = vsel %vm67, %v55, 0
    %74 = vmatprep.subr.mxu0 0.0
    %75 = vmatpush1.msra.mxu0 %v56
    %76 = vmatprep.subr.mxu0 0.0
    %77 = vmatpush1.msra.mxu0 %v57
    %78 = vmatprep.subr.mxu0 0.0
    %79 = vmatpush1.msra.mxu0 %v58
    %80 = vmatprep.subr.mxu0 0.0
    %81 = vmatpush1.msra.mxu0 %v59
    %82 = vmatprep.subr.mxu0 0.0
    %83 = vmatpush1.msra.mxu0 0.0
    %84 = vmatprep.subr.mxu0 0.0
    %85 = vmatpush1.msra.mxu0 0.0
    %86 = vmatprep.subr.mxu0 0.0
    %87 = vmatpush1.msra.mxu0 0.0
    %88 = vmatprep.subr.mxu0 0.0
    %89 = vmatpush1.msra.mxu0 0.0
    %90 = vmatprep.subr.mxu0 0.0
    %91 = vmatpush1.msra.mxu0 0.0
    %92 = vmatprep.subr.mxu0 0.0
    %93 = vmatpush1.msra.mxu0 0.0
    %94 = vmatprep.subr.mxu0 0.0
    %95 = vmatpush1.msra.mxu0 0.0
    %96 = vmatprep.subr.mxu0 0.0
    %97 = vmatpush1.msra.mxu0 0.0
    %98 = vmatprep.subr.mxu0 0.0
    %99 = vmatpush1.msra.mxu0 0.0
    %100 = vmatprep.subr.mxu0 0.0
    %101 = vmatpush1.msra.mxu0 0.0
    %102 = vmatprep.subr.mxu0 0.0
    %103 = vmatpush1.msra.mxu0 0.0
    %104 = vmatprep.subr.mxu0 0.0
    %105 = vmatpush1.msra.mxu0 0.0
    %106 = vmatprep.subr.mxu0 0.0
    %107 = vmatpush1.msra.mxu0 0.0
    %108 = vmatprep.subr.mxu0 0.0
    %109 = vmatpush1.msra.mxu0 0.0
    %110 = vmatprep.subr.mxu0 0.0
    %111 = vmatpush1.msra.mxu0 0.0
    %112 = vmatprep.subr.mxu0 0.0
    %113 = vmatpush1.msra.mxu0 0.0
    %114 = vmatprep.subr.mxu0 0.0
    %115 = vmatpush1.msra.mxu0 0.0
    %116 = vmatprep.subr.mxu0 0.0
    %117 = vmatpush1.msra.mxu0 0.0
    %118 = vmatprep.subr.mxu0 0.0
    %119 = vmatpush1.msra.mxu0 0.0
    %120 = vmatprep.subr.mxu0 0.0
    %121 = vmatpush1.msra.mxu0 0.0
    %122 = vmatprep.subr.mxu0 0.0
    %123 = vmatpush1.msra.mxu0 0.0
    %124 = vmatprep.subr.mxu0 0.0
    %125 = vmatpush1.msra.mxu0 0.0
    %126 = vmatprep.subr.mxu0 0.0
    %127 = vmatpush1.msra.mxu0 0.0
    %128 = vmatprep.subr.mxu0 0.0
    %129 = vmatpush1.msra.mxu0 0.0
    %130 = vmatprep.subr.mxu0 0.0
    %131 = vmatpush1.msra.mxu0 0.0
    %132 = vmatprep.subr.mxu0 0.0
    %133 = vmatpush1.msra.mxu0 0.0
    %134 = vmatprep.subr.mxu0 0.0
    %135 = vmatpush1.msra.mxu0 0.0
    %136 = vmatprep.subr.mxu0 0.0
    %137 = vmatpush1.msra.mxu0 0.0
    %138 = vmatprep.mubr.f32.mxu0 0.0
    %139 = vmatmul.mubr.f32.gmra.mrb[0].mxu0 %v69
    %v140 = vpop.f32.mrb[0].mxu0
    %v141 = vadd.f32 %v65, %v140
    %v142 = vpop.f32.mrb[0].mxu0
    %143 = vmatprep.mubr.f32.mxu0 0.0
    %144 = vmatmul.mubr.f32.gmra.mrb[0].mxu0 %v72
    %v145 = vpop.f32.mrb[0].mxu0
    %v146 = vadd.f32 %v65, %v145
    %v147 = vpop.f32.mrb[0].mxu0
    %148 = vdwg.mxu0
    %v149 = vmax.f32 %v141, 0.0
    %v150 = vmax.f32 %v146, 0.0
    %v151 = vld [vmem:[%s3] sm:$0xff]
    %v152 = vld [vmem:[%s3 + $0x8] sm:$0xff]
    %v153 = vld [vmem:[%s3 + $0x10] sm:$0xff]
    %v154 = vld [vmem:[%s3 + $0x18] sm:$0xff]
    %v155 = vld [vmem:[%s3 + $0x20] sm:$0xff]
    %v156 = vld [vmem:[%s3 + $0x28] sm:$0xff]
    %v157 = vld [vmem:[%s3 + $0x30] sm:$0xff]
    %v158 = vld [vmem:[%s3 + $0x38] sm:$0xff]
    %v159 = vld [vmem:[%s3 + $0x40] sm:$0xff]
    %v160 = vld [vmem:[%s3 + $0x48] sm:$0xff]
    %v161 = vld [vmem:[%s3 + $0x50] sm:$0xff]
    %v162 = vld [vmem:[%s3 + $0x58] sm:$0xff]
    %v163 = vld [vmem:[%s3 + $0x60] sm:$0xff]
    %v164 = vld [vmem:[%s3 + $0x68] sm:$0xff]
    %v165 = vld [vmem:[%s3 + $0x70] sm:$0xff]
    %v166 = vld [vmem:[%s3 + $0x78] sm:$0xff]
    %v167 = vld [vmem:[%s4] sm:$0x1]
    %v169 = vlaneseq
    %v170 = vshrl.u32 %v169, 7
    %v171 = vsub.s32 0, %v170
    %v172 = vrot.slane %v167, %v171
    %174 = vmatprep.subr.mxu0 0.0
    %175 = vmatpush1.msra.mxu0 %v151
    %176 = vmatprep.subr.mxu0 0.0
    %177 = vmatpush1.msra.mxu0 %v152
    %178 = vmatprep.subr.mxu0 0.0
    %179 = vmatpush1.msra.mxu0 %v153
    %180 = vmatprep.subr.mxu0 0.0
    %181 = vmatpush1.msra.mxu0 %v154
    %182 = vmatprep.subr.mxu0 0.0
    %183 = vmatpush1.msra.mxu0 %v155
    %184 = vmatprep.subr.mxu0 0.0
    %185 = vmatpush1.msra.mxu0 %v156
    %186 = vmatprep.subr.mxu0 0.0
    %187 = vmatpush1.msra.mxu0 %v157
    %188 = vmatprep.subr.mxu0 0.0
    %189 = vmatpush1.msra.mxu0 %v158
    %190 = vmatprep.subr.mxu0 0.0
    %191 = vmatpush1.msra.mxu0 %v159
    %192 = vmatprep.subr.mxu0 0.0
    %193 = vmatpush1.msra.mxu0 %v160
    %194 = vmatprep.subr.mxu0 0.0
    %195 = vmatpush1.msra.mxu0 %v161
    %196 = vmatprep.subr.mxu0 0.0
    %197 = vmatpush1.msra.mxu0 %v162
    %198 = vmatprep.subr.mxu0 0.0
    %199 = vmatpush1.msra.mxu0 %v163
    %200 = vmatprep.subr.mxu0 0.0
    %201 = vmatpush1.msra.mxu0 %v164
    %202 = vmatprep.subr.mxu0 0.0
    %203 = vmatpush1.msra.mxu0 %v165
    %204 = vmatprep.subr.mxu0 0.0
    %205 = vmatpush1.msra.mxu0 %v166
    %206 = vmatprep.subr.mxu0 0.0
    %207 = vmatpush1.msra.mxu0 0.0
    %208 = vmatprep.subr.mxu0 0.0
    %209 = vmatpush1.msra.mxu0 0.0
    %210 = vmatprep.subr.mxu0 0.0
    %211 = vmatpush1.msra.mxu0 0.0
    %212 = vmatprep.subr.mxu0 0.0
    %213 = vmatpush1.msra.mxu0 0.0
    %214 = vmatprep.subr.mxu0 0.0
    %215 = vmatpush1.msra.mxu0 0.0
    %216 = vmatprep.subr.mxu0 0.0
    %217 = vmatpush1.msra.mxu0 0.0
    %218 = vmatprep.subr.mxu0 0.0
    %219 = vmatpush1.msra.mxu0 0.0
    %220 = vmatprep.subr.mxu0 0.0
    %221 = vmatpush1.msra.mxu0 0.0
    %222 = vmatprep.subr.mxu0 0.0
    %223 = vmatpush1.msra.mxu0 0.0
    %224 = vmatprep.subr.mxu0 0.0
    %225 = vmatpush1.msra.mxu0 0.0
    %226 = vmatprep.subr.mxu0 0.0
    %227 = vmatpush1.msra.mxu0 0.0
    %228 = vmatprep.subr.mxu0 0.0
    %229 = vmatpush1.msra.mxu0 0.0
    %230 = vmatprep.subr.mxu0 0.0
    %231 = vmatpush1.msra.mxu0 0.0
    %232 = vmatprep.subr.mxu0 0.0
    %233 = vmatpush1.msra.mxu0 0.0
    %234 = vmatprep.subr.mxu0 0.0
    %235 = vmatpush1.msra.mxu0 0.0
    %236 = vmatprep.subr.mxu0 0.0
    %237 = vmatpush1.msra.mxu0 0.0
    %238 = vmatprep.mubr.f32.mxu0 0.0
    %239 = vmatmul.mubr.f32.gmra.mrb[0].mxu0 %v149
    %v240 = vpop.f32.mrb[0].mxu0
    %v241 = vadd.f32 %v172, %v240
    %v242 = vpop.f32.mrb[0].mxu0
    %243 = vmatprep.mubr.f32.mxu0 0.0
    %244 = vmatmul.mubr.f32.gmra.mrb[0].mxu0 %v150
    %v245 = vpop.f32.mrb[0].mxu0
    %v246 = vadd.f32 %v172, %v245
    %v247 = vpop.f32.mrb[0].mxu0
    %248 = vdwg.mxu0
    %v249 = vmax.f32 %v241, 0.0
    %v250 = vmax.f32 %v246, 0.0
    %v251 = vld [vmem:[%s5] sm:$0xff]
    %v252 = vld [vmem:[%s5 + $0x8] sm:$0xff]
    %v253 = vld [vmem:[%s5 + $0x10] sm:$0xff]
    %v254 = vld [vmem:[%s5 + $0x18] sm:$0xff]
    %v255 = vld [vmem:[%s5 + $0x20] sm:$0xff]
    %v256 = vld [vmem:[%s5 + $0x28] sm:$0xff]
    %v257 = vld [vmem:[%s5 + $0x30] sm:$0xff]
    %v258 = vld [vmem:[%s5 + $0x38] sm:$0xff]
    %v259 = vld [vmem:[%s5 + $0x40] sm:$0xff]
    %v260 = vld [vmem:[%s5 + $0x48] sm:$0xff]
    %v261 = vld [vmem:[%s5 + $0x50] sm:$0xff]
    %v262 = vld [vmem:[%s5 + $0x58] sm:$0xff]
    %v263 = vld [vmem:[%s5 + $0x60] sm:$0xff]
    %v264 = vld [vmem:[%s5 + $0x68] sm:$0xff]
    %v265 = vld [vmem:[%s5 + $0x70] sm:$0xff]
    %v266 = vld [vmem:[%s5 + $0x78] sm:$0xff]
    %v267 = vld [vmem:[%s6] sm:$0x1]
    %v269 = vlaneseq
    %v270 = vshrl.u32 %v269, 7
    %v271 = vsub.s32 0, %v270
    %v272 = vrot.slane %v267, %v271
    %274 = vmatprep.subr.mxu0 0.0
    %275 = vmatpush1.msra.mxu0 %v251
    %276 = vmatprep.subr.mxu0 0.0
    %277 = vmatpush1.msra.mxu0 %v252
    %278 = vmatprep.subr.mxu0 0.0
    %279 = vmatpush1.msra.mxu0 %v253
    %280 = vmatprep.subr.mxu0 0.0
    %281 = vmatpush1.msra.mxu0 %v254
    %282 = vmatprep.subr.mxu0 0.0
    %283 = vmatpush1.msra.mxu0 %v255
    %284 = vmatprep.subr.mxu0 0.0
    %285 = vmatpush1.msra.mxu0 %v256
    %286 = vmatprep.subr.mxu0 0.0
    %287 = vmatpush1.msra.mxu0 %v257
    %288 = vmatprep.subr.mxu0 0.0
    %289 = vmatpush1.msra.mxu0 %v258
    %290 = vmatprep.subr.mxu0 0.0
    %291 = vmatpush1.msra.mxu0 %v259
    %292 = vmatprep.subr.mxu0 0.0
    %293 = vmatpush1.msra.mxu0 %v260
    %294 = vmatprep.subr.mxu0 0.0
    %295 = vmatpush1.msra.mxu0 %v261
    %296 = vmatprep.subr.mxu0 0.0
    %297 = vmatpush1.msra.mxu0 %v262
    %298 = vmatprep.subr.mxu0 0.0
    %299 = vmatpush1.msra.mxu0 %v263
    %300 = vmatprep.subr.mxu0 0.0
    %301 = vmatpush1.msra.mxu0 %v264
    %302 = vmatprep.subr.mxu0 0.0
    %303 = vmatpush1.msra.mxu0 %v265
    %304 = vmatprep.subr.mxu0 0.0
    %305 = vmatpush1.msra.mxu0 %v266
    %306 = vmatprep.subr.mxu0 0.0
    %307 = vmatpush1.msra.mxu0 0.0
    %308 = vmatprep.subr.mxu0 0.0
    %309 = vmatpush1.msra.mxu0 0.0
    %310 = vmatprep.subr.mxu0 0.0
    %311 = vmatpush1.msra.mxu0 0.0
    %312 = vmatprep.subr.mxu0 0.0
    %313 = vmatpush1.msra.mxu0 0.0
    %314 = vmatprep.subr.mxu0 0.0
    %315 = vmatpush1.msra.mxu0 0.0
    %316 = vmatprep.subr.mxu0 0.0
    %317 = vmatpush1.msra.mxu0 0.0
    %318 = vmatprep.subr.mxu0 0.0
    %319 = vmatpush1.msra.mxu0 0.0
    %320 = vmatprep.subr.mxu0 0.0
    %321 = vmatpush1.msra.mxu0 0.0
    %322 = vmatprep.subr.mxu0 0.0
    %323 = vmatpush1.msra.mxu0 0.0
    %324 = vmatprep.subr.mxu0 0.0
    %325 = vmatpush1.msra.mxu0 0.0
    %326 = vmatprep.subr.mxu0 0.0
    %327 = vmatpush1.msra.mxu0 0.0
    %328 = vmatprep.subr.mxu0 0.0
    %329 = vmatpush1.msra.mxu0 0.0
    %330 = vmatprep.subr.mxu0 0.0
    %331 = vmatpush1.msra.mxu0 0.0
    %332 = vmatprep.subr.mxu0 0.0
    %333 = vmatpush1.msra.mxu0 0.0
    %334 = vmatprep.subr.mxu0 0.0
    %335 = vmatpush1.msra.mxu0 0.0
    %336 = vmatprep.subr.mxu0 0.0
    %337 = vmatpush1.msra.mxu0 0.0
    %338 = vmatprep.mubr.f32.mxu0 0.0
    %339 = vmatmul.mubr.f32.gmra.mrb[0].mxu0 %v249
    %v340 = vpop.f32.mrb[0].mxu0
    %v341 = vadd.f32 %v272, %v340
    %v342 = vpop.f32.mrb[0].mxu0
    %343 = vmatprep.mubr.f32.mxu0 0.0
    %344 = vmatmul.mubr.f32.gmra.mrb[0].mxu0 %v250
    %v345 = vpop.f32.mrb[0].mxu0
    %v346 = vadd.f32 %v272, %v345
    %v347 = vpop.f32.mrb[0].mxu0
    %348 = vdwg.mxu0
    %vm349 = vcmask 15360
    %350 = vst.msk [vmem:[%s7] sm:$0xff] %vm349, %v341
    %351 = vst.msk [vmem:[%s7 + $0x8] sm:$0xff] %vm349, %v346
    // Predicated region
    $region38: #{tpu_custom_call.1} parent=1 // pred_check
      _
    $region39: #{tpu_custom_call.1} parent=1 // pred_check_branch
      %353 = sbr.rel (0) target = $region41
    $region40: #{tpu_custom_call.1} parent=1 // pred_region
      _
    $region41: #{tpu_custom_call.1} parent=1 // pred_fallthru
      _
    // Predicated region
    $region42: #{tpu_custom_call.1} parent=1 // pred_check
      _
    $region43: #{tpu_custom_call.1} parent=1 // pred_check_branch
      %355 = sbr.rel (0) target = $region45
    $region44: #{tpu_custom_call.1} parent=1 // pred_region
      _
    $region45: #{tpu_custom_call.1} parent=1 // pred_fallthru
      _
    %356 = vsyncpa [#allocation3], 1
    %357 = vsyncpa [#allocation5], 1

</llo_original>
